<compile_context>
chip_gen: v7x
topology: tpu7x:2x2x1
jax: 0.10.0
libtpu: 0.0.40
codegen_flags: <defaults>
</compile_context>

<pallas_src>
import jax
import jax.numpy as jnp
from jax.experimental import pallas as pl
from jax.experimental.pallas import tpu as pltpu

_EPS = 1e-5


# ----------------------------------------------------------------------------
# Pallas kernel
# ----------------------------------------------------------------------------
def _make_kernel(W, HW, Cpad, n_lanes, preact):
    pow2 = ((W & (W - 1)) == 0) and ((HW & (HW - 1)) == 0)

    def compute(x_bf16, w1_ref, b2_ref, w9_ref, b3_ref, w4_ref, b4_ref, o_ref):
        # 1x1 conv (Cin -> Cmid, BN2 scale folded into rows) + bias + ReLU
        h1 = jnp.maximum(
            jnp.dot(w1_ref[...], x_bf16, preferred_element_type=jnp.float32)
            + b2_ref[...], 0.0)                                    # (Cpad, L) f32

        # Zero-padding validity masks, built in-kernel from a lane iota
        # (no mask tensor in HBM/VMEM).  lane = b*H*W + y*W + x within block.
        lane = jax.lax.broadcasted_iota(jnp.int32, (1, n_lanes), 1)
        if pow2:
            col = lane & (W - 1)          # x coordinate inside the row
            pos = lane & (HW - 1)         # flat position inside the image
        else:
            col = lane % W                # NOTE: s32 vector rem by a constant
            pos = lane % HW
        left_ok = jnp.where(col > 0, 1.0, 0.0)        # source x-1 in bounds
        right_ok = jnp.where(col < W - 1, 1.0, 0.0)   # source x+1 in bounds
        up_ok = jnp.where(pos >= W, 1.0, 0.0)         # source y-1 in bounds
        down_ok = jnp.where(pos < HW - W, 1.0, 0.0)   # source y+1 in bounds

        # 3x3 conv, restructured: roll/mask h1 into its tap copies BEFORE the
        # matmul, stack them along the contraction axis and let the MXU do the
        # 9-way tap reduction.  pltpu.roll(x, s)[p] == x[p - s], so shift = -d
        # (mod n_lanes) fetches position p + d; masks factor row*col and the
        # row mask is applied after the vertical roll, which keeps every
        # wrap-around across row/image/padding boundaries zeroed.
        h_l = left_ok * pltpu.roll(h1, shift=1, axis=1)              # h1[p-1]
        h_r = right_ok * pltpu.roll(h1, shift=n_lanes - 1, axis=1)   # h1[p+1]
        row_stk = jnp.concatenate([h_l, h1, h_r], axis=0)            # (3*Cpad, L)
        up_stk = up_ok * pltpu.roll(row_stk, shift=W, axis=1)              # p-W
        dn_stk = down_ok * pltpu.roll(row_stk, shift=n_lanes - W, axis=1)   # p+W
        stk = jnp.concatenate([up_stk, row_stk, dn_stk], axis=0)     # (9*Cpad, L)

        # single K = 9*Cpad matmul (BN3 scale folded into w9 rows) + bias + ReLU
        h2 = jnp.maximum(
            jnp.dot(w9_ref[...], stk.astype(jnp.bfloat16),
                    preferred_element_type=jnp.float32) + b3_ref[...], 0.0)

        # final 1x1 conv (Cmid -> Cout) + bias
        out = jnp.dot(w4_ref[...], h2.astype(jnp.bfloat16),
                      preferred_element_type=jnp.float32) + b4_ref[...]
        o_ref[...] = out.astype(o_ref.dtype)

    if preact:
        def kernel(x_ref, s0_ref, b0_ref,
                   w1_ref, b2_ref, w9_ref, b3_ref, w4_ref, b4_ref, o_ref):
            x = jnp.maximum(
                x_ref[...].astype(jnp.float32) * s0_ref[...] + b0_ref[...], 0.0)
            compute(x.astype(jnp.bfloat16),
                    w1_ref, b2_ref, w9_ref, b3_ref, w4_ref, b4_ref, o_ref)
    else:
        def kernel(x_ref, w1_ref, b2_ref, w9_ref, b3_ref, w4_ref, b4_ref, o_ref):
            compute(x_ref[...].astype(jnp.bfloat16),
                    w1_ref, b2_ref, w9_ref, b3_ref, w4_ref, b4_ref, o_ref)
    return kernel


# ----------------------------------------------------------------------------
# Lane-block (images per grid step) selection
# ----------------------------------------------------------------------------
def _pick_bblk(B, HW, Cin, Cpad, Cout, budget_bytes=24 << 20):
    """Largest divisor of B such that (a) the per-step VMEM working set stays
    under `budget_bytes`, and (b) at least 2 grid steps remain when B >= 2
    (keeps both v7x TensorCores busy; the extra ~0.35us step is noise on the
    single-TC v5e/v6e).  Prefers blocks whose lane width is already a
    multiple of 128 so no padding is needed."""
    per_lane = (2 * Cin * 4               # x block, double-buffered (f32 worst case)
                + 2 * Cout * 4            # out block, double-buffered
                + Cpad * 4 * (1 + 3 + 9)  # h1, row stack, 9-tap stack (f32)
                + Cpad * 2 * 9            # bf16 copy of the stack fed to the MXU
                + Cpad * 4 + Cout * 4)    # h2, pre-store result
    max_lanes = max(128, budget_bytes // per_lane)
    limit = min(max(1, max_lanes // HW), max(1, B // 2))
    divisors = [d for d in range(1, min(B, limit) + 1) if B % d == 0]
    aligned = [d for d in divisors if (d * HW) % 128 == 0]
    return max(aligned) if aligned else max(divisors)


# ----------------------------------------------------------------------------
# Wrapper: parameter folding + pallas_call
# ----------------------------------------------------------------------------
def conv_block_forward(x_nchw, params, stride, block_type, x_dtype=jnp.float32):
    # x_dtype=jnp.bfloat16 halves input HBM traffic (useful on v5e); kept f32
    # by default to match the f32 reference as closely as possible.
    B, Cin, H, W = x_nchw.shape
    HW = H * W
    w1, b1 = params["conv1_w"], params["conv1_b"]   # (Cmid, Cin, 1, 1)
    w2, b2 = params["conv2_w"], params["conv2_b"]   # (Cmid, Cmid, 3, 3)
    w3, b3 = params["conv3_w"], params["conv3_b"]   # (Cout, Cmid, 1, 1)
    Cmid, Cout = w1.shape[0], w3.shape[0]
    Cpad = ((Cmid + 7) // 8) * 8                    # sublane-aligned channel pad
    preact = block_type != "no_preact"

    def bn_fold(stats):                             # inference-mode BN
        g, beta, m, v = stats
        s = g / jnp.sqrt(v + _EPS)
        return s, beta - m * s

    s2, t2 = bn_fold(params["bn2"])
    s3, t3 = bn_fold(params["bn3"])

    # BN scales folded into MXU weight rows; conv biases folded into BN biases.
    w1s = (jnp.zeros((Cpad, Cin), jnp.float32)
           .at[:Cmid].set(w1[:, :, 0, 0] * s2[:, None]).astype(jnp.bfloat16))
    bias_h1 = jnp.zeros((Cpad,), jnp.float32).at[:Cmid].set(t2 + s2 * b1)

    w2s = w2 * s3[:, None, None, None]                            # (Cmid,Cmid,3,3)
    # (Cpad, 9*Cpad): row = output channel, column = tap t * Cpad + input ch,
    # t = (oy+1)*3 + (ox+1) matching the in-kernel stack order.
    w9 = (jnp.zeros((Cpad, 9, Cpad), jnp.float32)
          .at[:Cmid, :, :Cmid]
          .set(jnp.transpose(w2s, (0, 2, 3, 1)).reshape(Cmid, 9, Cmid))
          .reshape(Cpad, 9 * Cpad).astype(jnp.bfloat16))
    bias_h2 = jnp.zeros((Cpad,), jnp.float32).at[:Cmid].set(t3 + s3 * b2)

    w4p = (jnp.zeros((Cout, Cpad), jnp.float32)
           .at[:, :Cmid].set(w3[:, :, 0, 0]).astype(jnp.bfloat16))

    # lane-block selection: VMEM budget, >= 2 grid steps, 128-aligned lanes
    bblk = _pick_bblk(B, HW, Cin, Cpad, Cout)
    nblk = B // bblk
    lanes_blk = bblk * HW
    n_pad = ((lanes_blk + 127) // 128) * 128

    # Layout glue: channels -> sublanes, flattened (batch, y, x) -> lanes.
    # In a multi-block network this (C, B*H*W) layout would be kept between
    # consecutive conv_blocks so these transposes are paid once, not per block.
    x_t = jnp.transpose(x_nchw, (1, 0, 2, 3)).reshape(Cin, B * HW).astype(x_dtype)
    if n_pad != lanes_blk:
        x_t = jnp.pad(x_t.reshape(Cin, nblk, lanes_blk),
                      ((0, 0), (0, 0), (0, n_pad - lanes_blk)))
        x_t = x_t.reshape(Cin, nblk * n_pad)

    kernel = _make_kernel(W, HW, Cpad, n_pad, preact)

    def const(shape):
        return pl.BlockSpec(shape, lambda i, _n=len(shape): (0,) * _n)

    inputs = [x_t]
    in_specs = [pl.BlockSpec((Cin, n_pad), lambda i: (0, i))]
    if preact:
        scale0, bias0 = bn_fold(params["bn0"])
        inputs += [scale0.reshape(Cin, 1), bias0.reshape(Cin, 1)]
        in_specs += [const((Cin, 1)), const((Cin, 1))]
    inputs += [w1s, bias_h1.reshape(Cpad, 1), w9, bias_h2.reshape(Cpad, 1),
               w4p, b3.reshape(Cout, 1)]
    in_specs += [const((Cpad, Cin)), const((Cpad, 1)), const((Cpad, 9 * Cpad)),
                 const((Cpad, 1)), const((Cout, Cpad)), const((Cout, 1))]

    grid_spec = pltpu.PrefetchScalarGridSpec(
        num_scalar_prefetch=0,
        grid=(nblk,),
        in_specs=in_specs,
        out_specs=pl.BlockSpec((Cout, n_pad), lambda i: (0, i)),
    )

    out_t = pl.pallas_call(
        kernel,
        out_shape=jax.ShapeDtypeStruct((Cout, nblk * n_pad), jnp.float32),
        grid_spec=grid_spec,
        compiler_params=pltpu.CompilerParams(
            dimension_semantics=("parallel",),
            vmem_limit_bytes=32 * 1024 * 1024),
    )(*inputs)

    if n_pad != lanes_blk:
        out_t = out_t.reshape(Cout, nblk, n_pad)[:, :, :lanes_blk]
    out = jnp.transpose(out_t.reshape(Cout, B, H, W), (1, 0, 2, 3))
    if stride > 1:
        # BN3 / ReLU / final 1x1 conv are pointwise, so subsampling commutes.
        # TODO(synk): move the stride-2 subsampling in-kernel via a phase-major
        # (space-to-depth) lane layout so the tail matmul/store only touches
        # 1/4 of the lanes; requires rebuilding the roll/mask scheme.
        out = out[:, :, ::stride, ::stride]
    return out


# ----------------------------------------------------------------------------
# Deterministic parameter init (shapes match the PyTorch module __init__)
# ----------------------------------------------------------------------------
def init_params(key, numIn, numOut):
    Cmid = int(numOut / 2)
    ks = jax.random.split(key, 6)

    def bn_params(k, c):
        k1, k2, k3, k4 = jax.random.split(k, 4)
        gamma = jax.random.uniform(k1, (c,), jnp.float32, 0.5, 1.5)
        beta = 0.1 * jax.random.normal(k2, (c,), jnp.float32)
        mean = 0.1 * jax.random.normal(k3, (c,), jnp.float32)
        var = jax.random.uniform(k4, (c,), jnp.float32, 0.5, 1.5)
        return gamma, beta, mean, var

    def conv_params(k, cout, cin, kh, kw):
        k1, k2 = jax.random.split(k)
        fan_in = cin * kh * kw
        w = jax.random.normal(k1, (cout, cin, kh, kw), jnp.float32) / jnp.sqrt(fan_in)
        b = 0.1 * jax.random.normal(k2, (cout,), jnp.float32)
        return w, b

    params = {}
    params["bn0"] = bn_params(ks[0], numIn)
    params["conv1_w"], params["conv1_b"] = conv_params(ks[1], Cmid, numIn, 1, 1)
    params["bn2"] = bn_params(ks[2], Cmid)
    params["conv2_w"], params["conv2_b"] = conv_params(ks[3], Cmid, Cmid, 3, 3)
    params["bn3"] = bn_params(ks[4], Cmid)
    params["conv3_w"], params["conv3_b"] = conv_params(ks[5], numOut, Cmid, 1, 1)
    return params


# ----------------------------------------------------------------------------
# Pure-JAX reference (inference-mode BN), for correctness checking
# ----------------------------------------------------------------------------
def conv_block_reference(x, params, stride, block_type):
    def bn(y, stats):
        g, b, m, v = stats
        s = (g / jnp.sqrt(v + _EPS))[None, :, None, None]
        return (y - m[None, :, None, None]) * s + b[None, :, None, None]

    def conv(y, w, b, s=1, p=0):
        o = jax.lax.conv_general_dilated(
            y, w, (s, s), [(p, p), (p, p)],
            dimension_numbers=("NCHW", "OIHW", "NCHW"))
        return o + b[None, :, None, None]

    y = x
    if block_type != "no_preact":
        y = jax.nn.relu(bn(y, params["bn0"]))
    y = jax.nn.relu(bn(conv(y, params["conv1_w"], params["conv1_b"]), params["bn2"]))
    y = jax.nn.relu(bn(conv(y, params["conv2_w"], params["conv2_b"], s=stride, p=1),
                       params["bn3"]))
    y = conv(y, params["conv3_w"], params["conv3_b"])
    return y


if __name__ == "__main__":
    key = jax.random.PRNGKey(0)
    kx, kp = jax.random.split(key)

    B, numIn, numOut, H, W = 2, 4, 8, 16, 16
    x = jax.random.normal(kx, (B, numIn, H, W), jnp.float32)
    params = init_params(kp, numIn, numOut)

    # exercise both the pre-activation branch and the strided conv
    for stride, block_type in [(2, "preact"), (1, "no_preact")]:
        out = jax.block_until_ready(conv_block_forward(x, params, stride, block_type))
        ref = jax.block_until_ready(conv_block_reference(x, params, stride, block_type))
        assert out.shape == ref.shape, (out.shape, ref.shape)
        err = float(jnp.max(jnp.abs(out - ref)))
        assert err < 5e-2, err

    print("KERNEL_OK")
</pallas_src>

<mosaic_0001>
module attributes {stable_mosaic.version = 11 : i64} {
  func.func @kernel(%arg0: i32, %arg1: memref<4x256xf32, #tpu.memory_space<vmem>>, %arg2: memref<4x1xf32, #tpu.memory_space<vmem>>, %arg3: memref<4x1xf32, #tpu.memory_space<vmem>>, %arg4: memref<8x4xbf16, #tpu.memory_space<vmem>>, %arg5: memref<8x1xf32, #tpu.memory_space<vmem>>, %arg6: memref<8x72xbf16, #tpu.memory_space<vmem>>, %arg7: memref<8x1xf32, #tpu.memory_space<vmem>>, %arg8: memref<8x8xbf16, #tpu.memory_space<vmem>>, %arg9: memref<8x1xf32, #tpu.memory_space<vmem>>, %arg10: memref<8x256xf32, #tpu.memory_space<vmem>>) attributes {dimension_semantics = [#tpu.dimension_semantics<parallel>], iteration_bounds = array<i64: 2>, scalar_prefetch = 0 : i64, scratch_operands = 0 : i64, tpu.core_type = #tpu.core_type<tc>, window_params = [{transform_indices = @transform_0, window_bounds = array<i64: 4, 256>}, {pipeline_mode = #tpu.pipeline_mode<synchronous>, transform_indices = @transform_1, window_bounds = array<i64: 4, 1>}, {pipeline_mode = #tpu.pipeline_mode<synchronous>, transform_indices = @transform_2, window_bounds = array<i64: 4, 1>}, {pipeline_mode = #tpu.pipeline_mode<synchronous>, transform_indices = @transform_3, window_bounds = array<i64: 8, 4>}, {pipeline_mode = #tpu.pipeline_mode<synchronous>, transform_indices = @transform_4, window_bounds = array<i64: 8, 1>}, {pipeline_mode = #tpu.pipeline_mode<synchronous>, transform_indices = @transform_5, window_bounds = array<i64: 8, 72>}, {pipeline_mode = #tpu.pipeline_mode<synchronous>, transform_indices = @transform_6, window_bounds = array<i64: 8, 1>}, {pipeline_mode = #tpu.pipeline_mode<synchronous>, transform_indices = @transform_7, window_bounds = array<i64: 8, 8>}, {pipeline_mode = #tpu.pipeline_mode<synchronous>, transform_indices = @transform_8, window_bounds = array<i64: 8, 1>}, {transform_indices = @transform_9, window_bounds = array<i64: 8, 256>}]} {
    %c0 = arith.constant 0 : index
    %c0_0 = arith.constant 0 : index
    %0 = vector.load %arg1[%c0, %c0_0] : memref<4x256xf32, #tpu.memory_space<vmem>>, vector<4x256xf32>
    %c0_1 = arith.constant 0 : index
    %c0_2 = arith.constant 0 : index
    %1 = vector.load %arg2[%c0_1, %c0_2] : memref<4x1xf32, #tpu.memory_space<vmem>>, vector<4x1xf32>
    %2 = vector.broadcast %1 : vector<4x1xf32> to vector<4x256xf32>
    %3 = arith.mulf %0, %2 : vector<4x256xf32>
    %c0_3 = arith.constant 0 : index
    %c0_4 = arith.constant 0 : index
    %4 = vector.load %arg3[%c0_3, %c0_4] : memref<4x1xf32, #tpu.memory_space<vmem>>, vector<4x1xf32>
    %5 = vector.broadcast %4 : vector<4x1xf32> to vector<4x256xf32>
    %6 = arith.addf %3, %5 : vector<4x256xf32>
    %cst = arith.constant 0.000000e+00 : f32
    %7 = vector.broadcast %cst : f32 to vector<4x256xf32>
    %8 = arith.maximumf %6, %7 : vector<4x256xf32>
    %9 = arith.truncf %8 : vector<4x256xf32> to vector<4x256xbf16>
    %c0_5 = arith.constant 0 : index
    %c0_6 = arith.constant 0 : index
    %10 = vector.load %arg4[%c0_5, %c0_6] : memref<8x4xbf16, #tpu.memory_space<vmem>>, vector<8x4xbf16>
    %cst_7 = arith.constant dense<0.000000e+00> : vector<8x256xf32>
    %11 = tpu.matmul %10, %9, %cst_7 {dimension_numbers = #tpu.dot_dimension_numbers<[1], [0], [0], [1], [0, 0, 1, 1], [], []>} : vector<8x4xbf16>, vector<4x256xbf16>, vector<8x256xf32> -> vector<8x256xf32>
    %c0_8 = arith.constant 0 : index
    %c0_9 = arith.constant 0 : index
    %12 = vector.load %arg5[%c0_8, %c0_9] : memref<8x1xf32, #tpu.memory_space<vmem>>, vector<8x1xf32>
    %13 = vector.broadcast %12 : vector<8x1xf32> to vector<8x256xf32>
    %14 = arith.addf %11, %13 : vector<8x256xf32>
    %cst_10 = arith.constant 0.000000e+00 : f32
    %15 = vector.broadcast %cst_10 : f32 to vector<8x256xf32>
    %16 = arith.maximumf %14, %15 : vector<8x256xf32>
    %17 = tpu.iota {dimensions = array<i32: 1>} : vector<1x256xi32>
    %c15_i32 = arith.constant 15 : i32
    %18 = vector.broadcast %c15_i32 : i32 to vector<1x256xi32>
    %19 = arith.andi %17, %18 : vector<1x256xi32>
    %c255_i32 = arith.constant 255 : i32
    %20 = vector.broadcast %c255_i32 : i32 to vector<1x256xi32>
    %21 = arith.andi %17, %20 : vector<1x256xi32>
    %c0_i32 = arith.constant 0 : i32
    %22 = vector.broadcast %c0_i32 : i32 to vector<1x256xi32>
    %23 = arith.cmpi sgt, %19, %22 : vector<1x256xi32>
    %cst_11 = arith.constant 1.000000e+00 : f32
    %cst_12 = arith.constant 0.000000e+00 : f32
    %24 = vector.broadcast %cst_11 : f32 to vector<1x256xf32>
    %25 = vector.broadcast %cst_12 : f32 to vector<1x256xf32>
    %26 = arith.select %23, %24, %25 : vector<1x256xi1>, vector<1x256xf32>
    %c15_i32_13 = arith.constant 15 : i32
    %27 = vector.broadcast %c15_i32_13 : i32 to vector<1x256xi32>
    %28 = arith.cmpi slt, %19, %27 : vector<1x256xi32>
    %cst_14 = arith.constant 1.000000e+00 : f32
    %cst_15 = arith.constant 0.000000e+00 : f32
    %29 = vector.broadcast %cst_14 : f32 to vector<1x256xf32>
    %30 = vector.broadcast %cst_15 : f32 to vector<1x256xf32>
    %31 = arith.select %28, %29, %30 : vector<1x256xi1>, vector<1x256xf32>
    %c16_i32 = arith.constant 16 : i32
    %32 = vector.broadcast %c16_i32 : i32 to vector<1x256xi32>
    %33 = arith.cmpi sge, %21, %32 : vector<1x256xi32>
    %cst_16 = arith.constant 1.000000e+00 : f32
    %cst_17 = arith.constant 0.000000e+00 : f32
    %34 = vector.broadcast %cst_16 : f32 to vector<1x256xf32>
    %35 = vector.broadcast %cst_17 : f32 to vector<1x256xf32>
    %36 = arith.select %33, %34, %35 : vector<1x256xi1>, vector<1x256xf32>
    %c240_i32 = arith.constant 240 : i32
    %37 = vector.broadcast %c240_i32 : i32 to vector<1x256xi32>
    %38 = arith.cmpi slt, %21, %37 : vector<1x256xi32>
    %cst_18 = arith.constant 1.000000e+00 : f32
    %cst_19 = arith.constant 0.000000e+00 : f32
    %39 = vector.broadcast %cst_18 : f32 to vector<1x256xf32>
    %40 = vector.broadcast %cst_19 : f32 to vector<1x256xf32>
    %41 = arith.select %38, %39, %40 : vector<1x256xi1>, vector<1x256xf32>
    %c1_i32 = arith.constant 1 : i32
    %42 = tpu.dynamic_rotate %16 by %c1_i32 dim 1 : vector<8x256xf32>, i32 -> vector<8x256xf32>
    %43 = vector.broadcast %26 : vector<1x256xf32> to vector<8x256xf32>
    %44 = arith.mulf %43, %42 : vector<8x256xf32>
    %c255_i32_20 = arith.constant 255 : i32
    %45 = tpu.dynamic_rotate %16 by %c255_i32_20 dim 1 : vector<8x256xf32>, i32 -> vector<8x256xf32>
    %46 = vector.broadcast %31 : vector<1x256xf32> to vector<8x256xf32>
    %47 = arith.mulf %46, %45 : vector<8x256xf32>
    %48 = tpu.concatenate %44, %16, %47 in 0 : vector<8x256xf32>, vector<8x256xf32>, vector<8x256xf32> -> vector<24x256xf32>
    %c16_i32_21 = arith.constant 16 : i32
    %49 = tpu.dynamic_rotate %48 by %c16_i32_21 dim 1 : vector<24x256xf32>, i32 -> vector<24x256xf32>
    %50 = vector.broadcast %36 : vector<1x256xf32> to vector<24x256xf32>
    %51 = arith.mulf %50, %49 : vector<24x256xf32>
    %c240_i32_22 = arith.constant 240 : i32
    %52 = tpu.dynamic_rotate %48 by %c240_i32_22 dim 1 : vector<24x256xf32>, i32 -> vector<24x256xf32>
    %53 = vector.broadcast %41 : vector<1x256xf32> to vector<24x256xf32>
    %54 = arith.mulf %53, %52 : vector<24x256xf32>
    %55 = tpu.concatenate %51, %48, %54 in 0 : vector<24x256xf32>, vector<24x256xf32>, vector<24x256xf32> -> vector<72x256xf32>
    %c0_23 = arith.constant 0 : index
    %c0_24 = arith.constant 0 : index
    %56 = vector.load %arg6[%c0_23, %c0_24] : memref<8x72xbf16, #tpu.memory_space<vmem>>, vector<8x72xbf16>
    %57 = arith.truncf %55 : vector<72x256xf32> to vector<72x256xbf16>
    %cst_25 = arith.constant dense<0.000000e+00> : vector<8x256xf32>
    %58 = tpu.matmul %56, %57, %cst_25 {dimension_numbers = #tpu.dot_dimension_numbers<[1], [0], [0], [1], [0, 0, 1, 1], [], []>} : vector<8x72xbf16>, vector<72x256xbf16>, vector<8x256xf32> -> vector<8x256xf32>
    %c0_26 = arith.constant 0 : index
    %c0_27 = arith.constant 0 : index
    %59 = vector.load %arg7[%c0_26, %c0_27] : memref<8x1xf32, #tpu.memory_space<vmem>>, vector<8x1xf32>
    %60 = vector.broadcast %59 : vector<8x1xf32> to vector<8x256xf32>
    %61 = arith.addf %58, %60 : vector<8x256xf32>
    %cst_28 = arith.constant 0.000000e+00 : f32
    %62 = vector.broadcast %cst_28 : f32 to vector<8x256xf32>
    %63 = arith.maximumf %61, %62 : vector<8x256xf32>
    %c0_29 = arith.constant 0 : index
    %c0_30 = arith.constant 0 : index
    %64 = vector.load %arg8[%c0_29, %c0_30] : memref<8x8xbf16, #tpu.memory_space<vmem>>, vector<8x8xbf16>
    %65 = arith.truncf %63 : vector<8x256xf32> to vector<8x256xbf16>
    %cst_31 = arith.constant dense<0.000000e+00> : vector<8x256xf32>
    %66 = tpu.matmul %64, %65, %cst_31 {dimension_numbers = #tpu.dot_dimension_numbers<[1], [0], [0], [1], [0, 0, 1, 1], [], []>} : vector<8x8xbf16>, vector<8x256xbf16>, vector<8x256xf32> -> vector<8x256xf32>
    %c0_32 = arith.constant 0 : index
    %c0_33 = arith.constant 0 : index
    %67 = vector.load %arg9[%c0_32, %c0_33] : memref<8x1xf32, #tpu.memory_space<vmem>>, vector<8x1xf32>
    %68 = vector.broadcast %67 : vector<8x1xf32> to vector<8x256xf32>
    %69 = arith.addf %66, %68 : vector<8x256xf32>
    %c0_34 = arith.constant 0 : index
    %c0_35 = arith.constant 0 : index
    %70 = vector.load %arg10[%c0_34, %c0_35] : memref<8x256xf32, #tpu.memory_space<vmem>>, vector<8x256xf32>
    tpu.vector_store %arg10[%c0_34, %c0_35], %69 {strides = array<i32>} : memref<8x256xf32, #tpu.memory_space<vmem>>, vector<8x256xf32>,
    return
  }
  func.func @transform_0(%arg0: i32) -> (i32, i32) {
    %c0_i32 = arith.constant 0 : i32
    %c0_i32_0 = arith.constant 0 : i32
    return %c0_i32, %arg0 : i32, i32
  }
  func.func @transform_1(%arg0: i32) -> (i32, i32) {
    %c0_i32 = arith.constant 0 : i32
    %c0_i32_0 = arith.constant 0 : i32
    %c0_i32_1 = arith.constant 0 : i32
    return %c0_i32, %c0_i32_0 : i32, i32
  }
  func.func @transform_2(%arg0: i32) -> (i32, i32) {
    %c0_i32 = arith.constant 0 : i32
    %c0_i32_0 = arith.constant 0 : i32
    %c0_i32_1 = arith.constant 0 : i32
    return %c0_i32, %c0_i32_0 : i32, i32
  }
  func.func @transform_3(%arg0: i32) -> (i32, i32) {
    %c0_i32 = arith.constant 0 : i32
    %c0_i32_0 = arith.constant 0 : i32
    %c0_i32_1 = arith.constant 0 : i32
    return %c0_i32, %c0_i32_0 : i32, i32
  }
  func.func @transform_4(%arg0: i32) -> (i32, i32) {
    %c0_i32 = arith.constant 0 : i32
    %c0_i32_0 = arith.constant 0 : i32
    %c0_i32_1 = arith.constant 0 : i32
    return %c0_i32, %c0_i32_0 : i32, i32
  }
  func.func @transform_5(%arg0: i32) -> (i32, i32) {
    %c0_i32 = arith.constant 0 : i32
    %c0_i32_0 = arith.constant 0 : i32
    %c0_i32_1 = arith.constant 0 : i32
    return %c0_i32, %c0_i32_0 : i32, i32
  }
  func.func @transform_6(%arg0: i32) -> (i32, i32) {
    %c0_i32 = arith.constant 0 : i32
    %c0_i32_0 = arith.constant 0 : i32
    %c0_i32_1 = arith.constant 0 : i32
    return %c0_i32, %c0_i32_0 : i32, i32
  }
  func.func @transform_7(%arg0: i32) -> (i32, i32) {
    %c0_i32 = arith.constant 0 : i32
    %c0_i32_0 = arith.constant 0 : i32
    %c0_i32_1 = arith.constant 0 : i32
    return %c0_i32, %c0_i32_0 : i32, i32
  }
  func.func @transform_8(%arg0: i32) -> (i32, i32) {
    %c0_i32 = arith.constant 0 : i32
    %c0_i32_0 = arith.constant 0 : i32
    %c0_i32_1 = arith.constant 0 : i32
    return %c0_i32, %c0_i32_0 : i32, i32
  }
  func.func @transform_9(%arg0: i32) -> (i32, i32) {
    %c0_i32 = arith.constant 0 : i32
    %c0_i32_0 = arith.constant 0 : i32
    return %c0_i32, %arg0 : i32, i32
  }
}

</mosaic_0001>

<llo_original>
// kernel: tpu_custom_call.1
$region0: #{tpu_custom_call.1}
  #allocation0 [shape = 'u32[]', space=smem, size = 0x4, offset = 0x4, fixed_abs, tag = 'smem constant byte address 0x4 - core index']
  #allocation1 [shape = 'u32[144,128]{1,0:T(1,128)}', space=vmem, size = 0x12000, scoped, tag = 'internal scratch']
  %s0 = inlined_call_operand.vmem [shape: f32[4,512], index: 0, kind: input, shape index: {}]
  %s1 = inlined_call_operand.vmem [shape: f32[4,1], index: 1, kind: input, shape index: {}]
  %s2 = inlined_call_operand.vmem [shape: f32[4,1], index: 2, kind: input, shape index: {}]
  %s3 = inlined_call_operand.vmem [shape: bf16[8,4], index: 3, kind: input, shape index: {}]
  %s4 = inlined_call_operand.vmem [shape: f32[8,1], index: 4, kind: input, shape index: {}]
  %s5 = inlined_call_operand.vmem [shape: bf16[8,72], index: 5, kind: input, shape index: {}]
  %s6 = inlined_call_operand.vmem [shape: f32[8,1], index: 6, kind: input, shape index: {}]
  %s7 = inlined_call_operand.vmem [shape: bf16[8,8], index: 7, kind: input, shape index: {}]
  %s8 = inlined_call_operand.vmem [shape: f32[8,1], index: 8, kind: input, shape index: {}]
  %s9 = inlined_call_operand.hbm [shape: f32[8,512], index: 9, kind: output, shape index: {}]
  %s10 = sld [smem:[#allocation0]]
  $region69: #{tpu_custom_call.1} parent=0
    _
  %s12 = ssub.s32 1, %s10
  %s13 = scalar_select 0, %s12, %s10
  $region1: #{tpu_custom_call.1} parent=0
    #allocation2 [shape = 'u8[16384]{0}', space=vmem, size = 0x4000, scoped, tag = 'output window, operand 0']
    #allocation3 [shape = 's32[2]{0}', space=sflag, size = 0x8, scoped, tag = 'scoped memory for tpu_custom_call.1']
    %14 = vsyncpa [#allocation3], 0
    %s15 = scalar_lea.sflag [#allocation3], 1
    %16 = vsyncpa %s15, 0
    loop: start=0, step=1, limit=4
    $region2: #{tpu_custom_call.1} parent=1 // loop_pre_header
      _
    $region3: #{tpu_custom_call.1} parent=1 // loop_header
      %s18 = sphi 0, %s22
      %p19 = scmp.ge.s32.totalorder %s18, 4
      %s28 = sphi 0, %s30
      %s31 = sphi 0, %s28
      %s32 = sphi 0, %s31
      %s48 = sphi 0, %s32
      %s52 = sphi 0, %s52
      %s54 = sphi 0, %s52
      %s55 = sphi 0, %s54
      %s69 = sphi 0, %s55
      %s73 = sphi 0, %s73
      %s75 = sphi 0, %s73
      %s76 = sphi 0, %s75
      %s90 = sphi 0, %s76
      %s94 = sphi 0, %s94
      %s96 = sphi 0, %s94
      %s97 = sphi 0, %s96
      %s111 = sphi 0, %s97
      %s115 = sphi 0, %s115
      %s117 = sphi 0, %s115
      %s118 = sphi 0, %s117
      %s132 = sphi 0, %s118
      %s136 = sphi 0, %s136
      %s138 = sphi 0, %s136
      %s139 = sphi 0, %s138
      %s153 = sphi 0, %s139
      %s157 = sphi 0, %s157
      %s159 = sphi 0, %s157
      %s160 = sphi 0, %s159
      %s174 = sphi 0, %s160
      %s178 = sphi 0, %s178
      %s180 = sphi 0, %s178
      %s181 = sphi 0, %s180
      %s195 = sphi 0, %s181
      %s199 = sphi 0, %s199
      %s201 = sphi 0, %s199
      %s202 = sphi 0, %s201
      %s216 = sphi 0, %s202
      %s222 = sphi 0, %s224
      %s225 = sphi 0, %s222
      %s226 = sphi 0, %s225
      %s242 = sphi 0, %s226
    $region4: #{tpu_custom_call.1} parent=1 // loop_header_branch
      %21 = sbr.rel (%p19) target = $region8
    $region5: #{tpu_custom_call.1} parent=1 // loop_body
      %s23 = ssub.s32 %s18, 1
      %s24 = ssub.s32 %s18, 2
      %s25 = sadd.s32 %s18, 1
      %s26 = ssub.s32 %s18, %s25
      %p27 = scmp.eq.s32.totalorder %s26, 0
      %s29 = sadd.s32 %s28, 1
      %s30 = scalar_select %p27, %s28, %s29
      %p33 = pneg %p27
      %p34 = scmp.eq.s32.totalorder %s18, 1
      %p35 = por %p33, %p34
      %p36 = scmp.ne.s32.totalorder %s28, %s31
      %p37 = scmp.eq.s32.totalorder %s18, 0
      %p38 = por %p36, %p37
      %p39 = scmp.ne.s32.totalorder %s28, %s31
      %p40 = scmp.eq.s32.totalorder %s23, 1
      %p41 = por %p39, %p40
      %p42 = scmp.ne.s32.totalorder %s31, %s32
      %p43 = scmp.eq.s32.totalorder %s23, 0
      %p44 = por %p42, %p43
      %p45 = scmp.ne.s32.totalorder %s31, %s32
      %p46 = scmp.eq.s32.totalorder %s24, 1
      %p47 = por %p45, %p46
      %p49 = scmp.ne.s32.totalorder %s32, %s48
      %p50 = scmp.eq.s32.totalorder %s24, 0
      %p51 = por %p49, %p50
      %s53 = sadd.s32 %s52, 1
      %p56 = scmp.eq.s32.totalorder %s18, 1
      %p57 = scmp.ne.s32.totalorder %s52, %s54
      %p58 = scmp.eq.s32.totalorder %s18, 0
      %p59 = por %p57, %p58
      %p60 = scmp.ne.s32.totalorder %s52, %s54
      %p61 = scmp.eq.s32.totalorder %s23, 1
      %p62 = por %p60, %p61
      %p63 = scmp.ne.s32.totalorder %s54, %s55
      %p64 = scmp.eq.s32.totalorder %s23, 0
      %p65 = por %p63, %p64
      %p66 = scmp.ne.s32.totalorder %s54, %s55
      %p67 = scmp.eq.s32.totalorder %s24, 1
      %p68 = por %p66, %p67
      %p70 = scmp.ne.s32.totalorder %s55, %s69
      %p71 = scmp.eq.s32.totalorder %s24, 0
      %p72 = por %p70, %p71
      %s74 = sadd.s32 %s73, 1
      %p77 = scmp.eq.s32.totalorder %s18, 1
      %p78 = scmp.ne.s32.totalorder %s73, %s75
      %p79 = scmp.eq.s32.totalorder %s18, 0
      %p80 = por %p78, %p79
      %p81 = scmp.ne.s32.totalorder %s73, %s75
      %p82 = scmp.eq.s32.totalorder %s23, 1
      %p83 = por %p81, %p82
      %p84 = scmp.ne.s32.totalorder %s75, %s76
      %p85 = scmp.eq.s32.totalorder %s23, 0
      %p86 = por %p84, %p85
      %p87 = scmp.ne.s32.totalorder %s75, %s76
      %p88 = scmp.eq.s32.totalorder %s24, 1
      %p89 = por %p87, %p88
      %p91 = scmp.ne.s32.totalorder %s76, %s90
      %p92 = scmp.eq.s32.totalorder %s24, 0
      %p93 = por %p91, %p92
      %s95 = sadd.s32 %s94, 1
      %p98 = scmp.eq.s32.totalorder %s18, 1
      %p99 = scmp.ne.s32.totalorder %s94, %s96
      %p100 = scmp.eq.s32.totalorder %s18, 0
      %p101 = por %p99, %p100
      %p102 = scmp.ne.s32.totalorder %s94, %s96
      %p103 = scmp.eq.s32.totalorder %s23, 1
      %p104 = por %p102, %p103
      %p105 = scmp.ne.s32.totalorder %s96, %s97
      %p106 = scmp.eq.s32.totalorder %s23, 0
      %p107 = por %p105, %p106
      %p108 = scmp.ne.s32.totalorder %s96, %s97
      %p109 = scmp.eq.s32.totalorder %s24, 1
      %p110 = por %p108, %p109
      %p112 = scmp.ne.s32.totalorder %s97, %s111
      %p113 = scmp.eq.s32.totalorder %s24, 0
      %p114 = por %p112, %p113
      %s116 = sadd.s32 %s115, 1
      %p119 = scmp.eq.s32.totalorder %s18, 1
      %p120 = scmp.ne.s32.totalorder %s115, %s117
      %p121 = scmp.eq.s32.totalorder %s18, 0
      %p122 = por %p120, %p121
      %p123 = scmp.ne.s32.totalorder %s115, %s117
      %p124 = scmp.eq.s32.totalorder %s23, 1
      %p125 = por %p123, %p124
      %p126 = scmp.ne.s32.totalorder %s117, %s118
      %p127 = scmp.eq.s32.totalorder %s23, 0
      %p128 = por %p126, %p127
      %p129 = scmp.ne.s32.totalorder %s117, %s118
      %p130 = scmp.eq.s32.totalorder %s24, 1
      %p131 = por %p129, %p130
      %p133 = scmp.ne.s32.totalorder %s118, %s132
      %p134 = scmp.eq.s32.totalorder %s24, 0
      %p135 = por %p133, %p134
      %s137 = sadd.s32 %s136, 1
      %p140 = scmp.eq.s32.totalorder %s18, 1
      %p141 = scmp.ne.s32.totalorder %s136, %s138
      %p142 = scmp.eq.s32.totalorder %s18, 0
      %p143 = por %p141, %p142
      %p144 = scmp.ne.s32.totalorder %s136, %s138
      %p145 = scmp.eq.s32.totalorder %s23, 1
      %p146 = por %p144, %p145
      %p147 = scmp.ne.s32.totalorder %s138, %s139
      %p148 = scmp.eq.s32.totalorder %s23, 0
      %p149 = por %p147, %p148
      %p150 = scmp.ne.s32.totalorder %s138, %s139
      %p151 = scmp.eq.s32.totalorder %s24, 1
      %p152 = por %p150, %p151
      %p154 = scmp.ne.s32.totalorder %s139, %s153
      %p155 = scmp.eq.s32.totalorder %s24, 0
      %p156 = por %p154, %p155
      %s158 = sadd.s32 %s157, 1
      %p161 = scmp.eq.s32.totalorder %s18, 1
      %p162 = scmp.ne.s32.totalorder %s157, %s159
      %p163 = scmp.eq.s32.totalorder %s18, 0
      %p164 = por %p162, %p163
      %p165 = scmp.ne.s32.totalorder %s157, %s159
      %p166 = scmp.eq.s32.totalorder %s23, 1
      %p167 = por %p165, %p166
      %p168 = scmp.ne.s32.totalorder %s159, %s160
      %p169 = scmp.eq.s32.totalorder %s23, 0
      %p170 = por %p168, %p169
      %p171 = scmp.ne.s32.totalorder %s159, %s160
      %p172 = scmp.eq.s32.totalorder %s24, 1
      %p173 = por %p171, %p172
      %p175 = scmp.ne.s32.totalorder %s160, %s174
      %p176 = scmp.eq.s32.totalorder %s24, 0
      %p177 = por %p175, %p176
      %s179 = sadd.s32 %s178, 1
      %p182 = scmp.eq.s32.totalorder %s18, 1
      %p183 = scmp.ne.s32.totalorder %s178, %s180
      %p184 = scmp.eq.s32.totalorder %s18, 0
      %p185 = por %p183, %p184
      %p186 = scmp.ne.s32.totalorder %s178, %s180
      %p187 = scmp.eq.s32.totalorder %s23, 1
      %p188 = por %p186, %p187
      %p189 = scmp.ne.s32.totalorder %s180, %s181
      %p190 = scmp.eq.s32.totalorder %s23, 0
      %p191 = por %p189, %p190
      %p192 = scmp.ne.s32.totalorder %s180, %s181
      %p193 = scmp.eq.s32.totalorder %s24, 1
      %p194 = por %p192, %p193
      %p196 = scmp.ne.s32.totalorder %s181, %s195
      %p197 = scmp.eq.s32.totalorder %s24, 0
      %p198 = por %p196, %p197
      %s200 = sadd.s32 %s199, 1
      %p203 = scmp.eq.s32.totalorder %s18, 1
      %p204 = scmp.ne.s32.totalorder %s199, %s201
      %p205 = scmp.eq.s32.totalorder %s18, 0
      %p206 = por %p204, %p205
      %p207 = scmp.ne.s32.totalorder %s199, %s201
      %p208 = scmp.eq.s32.totalorder %s23, 1
      %p209 = por %p207, %p208
      %p210 = scmp.ne.s32.totalorder %s201, %s202
      %p211 = scmp.eq.s32.totalorder %s23, 0
      %p212 = por %p210, %p211
      %p213 = scmp.ne.s32.totalorder %s201, %s202
      %p214 = scmp.eq.s32.totalorder %s24, 1
      %p215 = por %p213, %p214
      %p217 = scmp.ne.s32.totalorder %s202, %s216
      %p218 = scmp.eq.s32.totalorder %s24, 0
      %p219 = por %p217, %p218
      %s220 = ssub.s32 %s18, %s25
      %p221 = scmp.eq.s32.totalorder %s220, 0
      %s223 = sadd.s32 %s222, 1
      %s224 = scalar_select %p221, %s222, %s223
      %p227 = pneg %p221
      %p228 = scmp.eq.s32.totalorder %s18, 1
      %p229 = por %p227, %p228
      %p230 = scmp.ne.s32.totalorder %s222, %s225
      %p231 = scmp.eq.s32.totalorder %s18, 0
      %p232 = por %p230, %p231
      %p233 = scmp.ne.s32.totalorder %s222, %s225
      %p234 = scmp.eq.s32.totalorder %s23, 1
      %p235 = por %p233, %p234
      %p236 = scmp.ne.s32.totalorder %s225, %s226
      %p237 = scmp.eq.s32.totalorder %s23, 0
      %p238 = por %p236, %p237
      %p239 = scmp.ne.s32.totalorder %s225, %s226
      %p240 = scmp.eq.s32.totalorder %s24, 1
      %p241 = por %p239, %p240
      %p243 = scmp.ne.s32.totalorder %s226, %s242
      %p244 = scmp.eq.s32.totalorder %s24, 0
      %p245 = por %p243, %p244
      %p246 = scmp.le.s32.totalorder 1, %s18
      %p247 = scmp.lt.s32.totalorder %s18, 3
      %p248 = pnand %p246, %p247
      %p249 = pneg %p248
      // Predicated region
      $region9: #{tpu_custom_call.1} parent=5 // pred_check
        _
      $region10: #{tpu_custom_call.1} parent=5 // pred_check_branch
        %251 = sbr.rel (%p248) target = $region12
      $region11: #{tpu_custom_call.1} parent=5 // pred_region
        %s252 = ssub.s32 %s18, 1
        // Predicated region
        $region13: #{tpu_custom_call.1} parent=11 // pred_check
          %p253 = pneg %p65
        $region14: #{tpu_custom_call.1} parent=11 // pred_check_branch
          %255 = sbr.rel (%p253) target = $region16
        $region15: #{tpu_custom_call.1} parent=11 // pred_region
          _
        $region16: #{tpu_custom_call.1} parent=11 // pred_fallthru
          _
        // Predicated region
        $region17: #{tpu_custom_call.1} parent=11 // pred_check
          %p256 = pneg %p86
        $region18: #{tpu_custom_call.1} parent=11 // pred_check_branch
          %258 = sbr.rel (%p256) target = $region20
        $region19: #{tpu_custom_call.1} parent=11 // pred_region
          _
        $region20: #{tpu_custom_call.1} parent=11 // pred_fallthru
          _
        // Predicated region
        $region21: #{tpu_custom_call.1} parent=11 // pred_check
          %p259 = pneg %p107
        $region22: #{tpu_custom_call.1} parent=11 // pred_check_branch
          %261 = sbr.rel (%p259) target = $region24
        $region23: #{tpu_custom_call.1} parent=11 // pred_region
          _
        $region24: #{tpu_custom_call.1} parent=11 // pred_fallthru
          _
        // Predicated region
        $region25: #{tpu_custom_call.1} parent=11 // pred_check
          %p262 = pneg %p128
        $region26: #{tpu_custom_call.1} parent=11 // pred_check_branch
          %264 = sbr.rel (%p262) target = $region28
        $region27: #{tpu_custom_call.1} parent=11 // pred_region
          _
        $region28: #{tpu_custom_call.1} parent=11 // pred_fallthru
          _
        // Predicated region
        $region29: #{tpu_custom_call.1} parent=11 // pred_check
          %p265 = pneg %p149
        $region30: #{tpu_custom_call.1} parent=11 // pred_check_branch
          %267 = sbr.rel (%p265) target = $region32
        $region31: #{tpu_custom_call.1} parent=11 // pred_region
          _
        $region32: #{tpu_custom_call.1} parent=11 // pred_fallthru
          _
        // Predicated region
        $region33: #{tpu_custom_call.1} parent=11 // pred_check
          %p268 = pneg %p170
        $region34: #{tpu_custom_call.1} parent=11 // pred_check_branch
          %270 = sbr.rel (%p268) target = $region36
        $region35: #{tpu_custom_call.1} parent=11 // pred_region
          _
        $region36: #{tpu_custom_call.1} parent=11 // pred_fallthru
          _
        // Predicated region
        $region37: #{tpu_custom_call.1} parent=11 // pred_check
          %p271 = pneg %p191
        $region38: #{tpu_custom_call.1} parent=11 // pred_check_branch
          %273 = sbr.rel (%p271) target = $region40
        $region39: #{tpu_custom_call.1} parent=11 // pred_region
          _
        $region40: #{tpu_custom_call.1} parent=11 // pred_fallthru
          _
        // Predicated region
        $region41: #{tpu_custom_call.1} parent=11 // pred_check
          %p274 = pneg %p212
        $region42: #{tpu_custom_call.1} parent=11 // pred_check_branch
          %276 = sbr.rel (%p274) target = $region44
        $region43: #{tpu_custom_call.1} parent=11 // pred_region
          _
        $region44: #{tpu_custom_call.1} parent=11 // pred_fallthru
          _
      $region12: #{tpu_custom_call.1} parent=5 // pred_fallthru
        _
      %p277 = scmp.lt.s32.totalorder %s18, 2
      // Predicated region
      $region45: #{tpu_custom_call.1} parent=5 // pred_check
        %p278 = pneg %p277
      $region46: #{tpu_custom_call.1} parent=5 // pred_check_branch
        %280 = sbr.rel (%p278) target = $region48
      $region47: #{tpu_custom_call.1} parent=5 // pred_region
        // Predicated region
        $region49: #{tpu_custom_call.1} parent=47 // pred_check
          %p281 = pneg %p38
        $region50: #{tpu_custom_call.1} parent=47 // pred_check_branch
          %283 = sbr.rel (%p281) target = $region52
        $region51: #{tpu_custom_call.1} parent=47 // pred_region
          %s284 = smul.u32 2, %s18
          %p285 = scmp.lt.s32.totalorder %s284, 3
          %s286 = scalar_select %p285, %s284, 3
          %s287 = smul.addr %s286, 4
          %s288 = scalar_lea.vmem %s0, %s287
          %s289 = smul.u32 2, %s18
        $region52: #{tpu_custom_call.1} parent=47 // pred_fallthru
          _
      $region48: #{tpu_custom_call.1} parent=5 // pred_fallthru
        _
      %p290 = scmp.le.s32.totalorder 1, %s18
      %p291 = scmp.lt.s32.totalorder %s18, 3
      %p292 = pnand %p290, %p291
      %p293 = pneg %p292
      // Predicated region
      $region53: #{tpu_custom_call.1} parent=5 // pred_check
        _
      $region54: #{tpu_custom_call.1} parent=5 // pred_check_branch
        %295 = sbr.rel (%p292) target = $region56
      $region55: #{tpu_custom_call.1} parent=5 // pred_region
        %s296 = ssub.s32 %s18, 1
        %s297 = smul.u32 2, %s23
        %p298 = scmp.lt.s32.totalorder %s297, 3
        %s299 = scalar_select %p298, %s297, 3
        %s300 = smul.addr %s299, 4
        %s301 = scalar_lea.vmem %s0, %s300
        %p302 = pneg %p44
        %p303 = pneg %p41
        %p304 = pneg %p65
        %p305 = pneg %p62
        %p306 = pneg %p86
        %p307 = pneg %p83
        %p308 = pneg %p107
        %p309 = pneg %p104
        %p310 = pneg %p128
        %p311 = pneg %p125
        %p312 = pneg %p149
        %p313 = pneg %p146
        %p314 = pneg %p170
        %p315 = pneg %p167
        %p316 = pneg %p191
        %p317 = pneg %p188
        %p318 = pneg %p212
        %p319 = pneg %p209
        %p320 = pneg %p238
        %p321 = pneg %p235
        %s322 = sand.u32 %s225, 1
        %s323 = scalar_lea.sflag [#allocation3], %s322
        %s324 = sand.u32 %s225, 1
        %s325 = smul.addr %s324, 16
        %s326 = scalar_lea.vmem [#allocation2], %s325
        %s327 = smul.u32 2, %s23
        %p328 = scmp.lt.s32.totalorder %s327, 3
        %s329 = scalar_select %p328, %s327, 3
        %s330 = smul.addr %s329, 4
        %s331 = scalar_lea.vmem %s0, %s330
        %s332 = smul.u32 2, %s23
        %s333 = smul.u32 2, %s23
        %v335 = vld [vmem:[%s331] sm:$0xff]
        %v336 = vld [vmem:[%s1] sm:$0xf]
        %338 = vset.pattern.permute.xlu0 0
        %339 = vperm.xlu0 %338, %v336
        %v340 = vpop.permute.xlu0 %339
        %v342 = vunpack.c.l.s4 839922192
        %v343 = vunpack.c.0.s8 %v342
        %v344 = vlaneseq
        %v345 = vshrl.u32 %v344, 7
        %v346 = vsub.s32 %v343, %v345
        %v347 = vrot.slane %v340, %v346
        %v349 = vmul.f32 %v335, %v347
        %v350 = vld [vmem:[%s2] sm:$0xf]
        %352 = vset.pattern.permute.xlu0 0
        %353 = vperm.xlu0 %352, %v350
        %v354 = vpop.permute.xlu0 %353
        %v356 = vunpack.c.l.s4 839922192
        %v357 = vunpack.c.0.s8 %v356
        %v358 = vlaneseq
        %v359 = vshrl.u32 %v358, 7
        %v360 = vsub.s32 %v357, %v359
        %v361 = vrot.slane %v354, %v360
        %v363 = vadd.f32 %v349, %v361
        %v364 = vmax.f32 %v363, 0.0
        %v366 = vcombine.high %v364, %v364
        %v368 = vpack.c.bf16 %v364, %v364
        %v369 = vpack.c.bf16 %v366, %v366
        %v370 = vld [vmem:[%s3] sm:$0xf]
        %v371 = vld [vmem:[%s4] sm:$0xff]
        %373 = vset.pattern.permute.xlu0 0
        %374 = vperm.xlu0 %373, %v371
        %v375 = vpop.permute.xlu0 %374
        %vm377 = vcmask 31744
        %v379 = vsel %vm377, %v370, 0
        %vm381 = vcmask 1041408
        %v383 = vsel %vm381, %v368, 0
        %v386 = vsel %vm381, %v369, 0
        %388 = vmatprep.subr.bf16.mxu0 %v386
        %389 = vmatpush1.bf16.msra.mxu0 %v383
        %390 = vmatprep.subr.bf16.mxu0 0
        %391 = vmatpush1.bf16.msra.mxu0 0
        %392 = vmatprep.subr.bf16.mxu0 0
        %393 = vmatpush1.bf16.msra.mxu0 0
        %394 = vmatprep.subr.bf16.mxu0 0
        %395 = vmatpush1.bf16.msra.mxu0 0
        %396 = vmatprep.subr.bf16.mxu0 0
        %397 = vmatpush1.bf16.msra.mxu0 0
        %398 = vmatprep.subr.bf16.mxu0 0
        %399 = vmatpush1.bf16.msra.mxu0 0
        %400 = vmatprep.subr.bf16.mxu0 0
        %401 = vmatpush1.bf16.msra.mxu0 0
        %402 = vmatprep.subr.bf16.mxu0 0
        %403 = vmatpush1.bf16.msra.mxu0 0
        %404 = vmatprep.subr.bf16.mxu0 0
        %405 = vmatpush1.bf16.msra.mxu0 0
        %406 = vmatprep.subr.bf16.mxu0 0
        %407 = vmatpush1.bf16.msra.mxu0 0
        %408 = vmatprep.subr.bf16.mxu0 0
        %409 = vmatpush1.bf16.msra.mxu0 0
        %410 = vmatprep.subr.bf16.mxu0 0
        %411 = vmatpush1.bf16.msra.mxu0 0
        %412 = vmatprep.subr.bf16.mxu0 0
        %413 = vmatpush1.bf16.msra.mxu0 0
        %414 = vmatprep.subr.bf16.mxu0 0
        %415 = vmatpush1.bf16.msra.mxu0 0
        %416 = vmatprep.subr.bf16.mxu0 0
        %417 = vmatpush1.bf16.msra.mxu0 0
        %418 = vmatprep.subr.bf16.mxu0 0
        %419 = vmatpush1.bf16.msra.mxu0 0
        %420 = vmatprep.mubr.bf16.mxu0 0
        %421 = vmatmul.mubr.bf16.gmra.mrb[0].mxu0 %v379
        %v422 = vpop.f32.mrb[0].mxu0
        %v423 = vadd.f32 %v375, %v422
        %v424 = vpop.f32.mrb[0].mxu0
        %v425 = vadd.f32 %v375, %v424
        %v426 = vpop.f32.mrb[0].mxu0
        %v427 = vpop.f32.mrb[0].mxu0
        %428 = vdwg.mxu0
        %v429 = vmax.f32 %v423, 0.0
        %v430 = vmax.f32 %v425, 0.0
        %v431 = vlaneseq
        %v432 = vand.u32 %v431, 127
        %v433 = vadd.s32 %v432, 128
        %v434 = vand.u32 %v432, 15
        %v435 = vand.u32 %v433, 15
        %v436 = vand.u32 %v432, 255
        %v437 = vand.u32 %v433, 255
        %vm438 = vcmp.gt.s32.totalorder %v434, 0
        %vm439 = vcmp.gt.s32.totalorder %v435, 0
        %v440 = vsel %vm438, 1.0, 0.0
        %v441 = vsel %vm439, 1.0, 0.0
        %vm442 = vcmp.lt.s32.totalorder %v434, 15
        %vm443 = vcmp.lt.s32.totalorder %v435, 15
        %v444 = vsel %vm442, 1.0, 0.0
        %v445 = vsel %vm443, 1.0, 0.0
        %vm446 = vcmp.ge.s32.totalorder %v436, 16
        %vm447 = vcmp.ge.s32.totalorder %v437, 16
        %v448 = vsel %vm446, 1.0, 0.0
        %v449 = vsel %vm447, 1.0, 0.0
        %vm450 = vcmp.lt.s32.totalorder %v436, 240
        %vm451 = vcmp.lt.s32.totalorder %v437, 240
        %v452 = vsel %vm450, 1.0, 0.0
        %v453 = vsel %vm451, 1.0, 0.0
        %454 = vrot.lane.b32.xlu0 %v429, 1
        %v455 = vpop.permute.xlu0 %454
        %456 = vrot.lane.b32.xlu0 %v430, 1
        %v457 = vpop.permute.xlu0 %456
        %vm458 = vcmp.lt.s32.totalorder %v432, 1
        %v459 = vsel %vm458, %v455, %v457
        %v460 = vsel %vm458, %v457, %v455
        %v461 = vmul.f32 %v440, %v460
        %v462 = vmul.f32 %v441, %v459
        %463 = vrot.lane.b32.xlu0 %v429, 127
        %v464 = vpop.permute.xlu0 %463
        %465 = vrot.lane.b32.xlu0 %v430, 127
        %v466 = vpop.permute.xlu0 %465
        %vm467 = vcmp.lt.s32.totalorder %v432, 127
        %v468 = vsel %vm467, %v464, %v466
        %v469 = vsel %vm467, %v466, %v464
        %v470 = vmul.f32 %v444, %v468
        %v471 = vmul.f32 %v445, %v469
        %472 = vrot.lane.b32.xlu0 %v461, 16
        %v473 = vpop.permute.xlu0 %472
        %474 = vrot.lane.b32.xlu0 %v429, 16
        %v475 = vpop.permute.xlu0 %474
        %476 = vrot.lane.b32.xlu0 %v470, 16
        %v477 = vpop.permute.xlu0 %476
        %478 = vrot.lane.b32.xlu0 %v462, 16
        %v479 = vpop.permute.xlu0 %478
        %480 = vrot.lane.b32.xlu0 %v430, 16
        %v481 = vpop.permute.xlu0 %480
        %482 = vrot.lane.b32.xlu0 %v471, 16
        %v483 = vpop.permute.xlu0 %482
        %vm484 = vcmp.lt.s32.totalorder %v432, 16
        %v485 = vsel %vm484, %v473, %v479
        %v486 = vsel %vm484, %v475, %v481
        %v487 = vsel %vm484, %v477, %v483
        %v488 = vsel %vm484, %v479, %v473
        %v489 = vsel %vm484, %v481, %v475
        %v490 = vsel %vm484, %v483, %v477
        %v491 = vmul.f32 %v448, %v488
        %v492 = vmul.f32 %v449, %v485
        %v493 = vmul.f32 %v448, %v489
        %v494 = vmul.f32 %v449, %v486
        %v495 = vmul.f32 %v448, %v490
        %v496 = vmul.f32 %v449, %v487
        %497 = vrot.lane.b32.xlu0 %v461, 112
        %v498 = vpop.permute.xlu0 %497
        %499 = vrot.lane.b32.xlu0 %v429, 112
        %v500 = vpop.permute.xlu0 %499
        %501 = vrot.lane.b32.xlu0 %v470, 112
        %v502 = vpop.permute.xlu0 %501
        %503 = vrot.lane.b32.xlu0 %v462, 112
        %v504 = vpop.permute.xlu0 %503
        %505 = vrot.lane.b32.xlu0 %v430, 112
        %v506 = vpop.permute.xlu0 %505
        %507 = vrot.lane.b32.xlu0 %v471, 112
        %v508 = vpop.permute.xlu0 %507
        %vm509 = vcmp.lt.s32.totalorder %v432, 112
        %v510 = vsel %vm509, %v498, %v504
        %v511 = vsel %vm509, %v500, %v506
        %v512 = vsel %vm509, %v502, %v508
        %v513 = vsel %vm509, %v504, %v498
        %v514 = vsel %vm509, %v506, %v500
        %v515 = vsel %vm509, %v508, %v502
        %v516 = vmul.f32 %v452, %v510
        %v517 = vmul.f32 %v453, %v513
        %v518 = vmul.f32 %v452, %v511
        %v519 = vmul.f32 %v453, %v514
        %v520 = vmul.f32 %v452, %v512
        %v521 = vmul.f32 %v453, %v515
        %v522 = vld [vmem:[%s5] sm:$0xf]
        %v523 = vpack.c.bf16 %v493, %v491
        %v524 = vpack.c.bf16 %v494, %v492
        %v525 = vpack.c.bf16 %v461, %v495
        %v526 = vpack.c.bf16 %v462, %v496
        %v527 = vpack.c.bf16 %v470, %v429
        %v528 = vpack.c.bf16 %v471, %v430
        %v529 = vpack.c.bf16 %v518, %v516
        %v530 = vpack.c.bf16 %v519, %v517
        %v531 = vpack.c.bf16 %v520, %v520
        %v532 = vpack.c.bf16 %v521, %v521
        %v533 = vld [vmem:[%s6] sm:$0xff]
        %535 = vset.pattern.permute.xlu0 0
        %536 = vperm.xlu0 %535, %v533
        %v537 = vpop.permute.xlu0 %536
        %vm539 = vcmask 588800
        %v541 = vsel %vm539, %v522, 0
        %vm543 = vcmask 1043456
        %v545 = vsel %vm543, %v531, 0
        %v548 = vsel %vm543, %v532, 0
        %550 = vmatprep.subr.bf16.mxu0 %v524
        %551 = vmatpush1.bf16.msra.mxu0 %v523
        %552 = vmatprep.subr.bf16.mxu0 %v526
        %553 = vmatpush1.bf16.msra.mxu0 %v525
        %554 = vmatprep.subr.bf16.mxu0 %v528
        %555 = vmatpush1.bf16.msra.mxu0 %v527
        %556 = vmatprep.subr.bf16.mxu0 %v530
        %557 = vmatpush1.bf16.msra.mxu0 %v529
        %558 = vmatprep.subr.bf16.mxu0 %v548
        %559 = vmatpush1.bf16.msra.mxu0 %v545
        %560 = vmatprep.subr.bf16.mxu0 0
        %561 = vmatpush1.bf16.msra.mxu0 0
        %562 = vmatprep.subr.bf16.mxu0 0
        %563 = vmatpush1.bf16.msra.mxu0 0
        %564 = vmatprep.subr.bf16.mxu0 0
        %565 = vmatpush1.bf16.msra.mxu0 0
        %566 = vmatprep.subr.bf16.mxu0 0
        %567 = vmatpush1.bf16.msra.mxu0 0
        %568 = vmatprep.subr.bf16.mxu0 0
        %569 = vmatpush1.bf16.msra.mxu0 0
        %570 = vmatprep.subr.bf16.mxu0 0
        %571 = vmatpush1.bf16.msra.mxu0 0
        %572 = vmatprep.subr.bf16.mxu0 0
        %573 = vmatpush1.bf16.msra.mxu0 0
        %574 = vmatprep.subr.bf16.mxu0 0
        %575 = vmatpush1.bf16.msra.mxu0 0
        %576 = vmatprep.subr.bf16.mxu0 0
        %577 = vmatpush1.bf16.msra.mxu0 0
        %578 = vmatprep.subr.bf16.mxu0 0
        %579 = vmatpush1.bf16.msra.mxu0 0
        %580 = vmatprep.subr.bf16.mxu0 0
        %581 = vmatpush1.bf16.msra.mxu0 0
        %582 = vmatprep.mubr.bf16.mxu0 0
        %583 = vmatmul.mubr.bf16.gmra.mrb[0].mxu0 %v541
        %v584 = vpop.f32.mrb[0].mxu0
        %v585 = vadd.f32 %v537, %v584
        %v586 = vpop.f32.mrb[0].mxu0
        %v587 = vadd.f32 %v537, %v586
        %v588 = vpop.f32.mrb[0].mxu0
        %v589 = vpop.f32.mrb[0].mxu0
        %590 = vdwg.mxu0
        %v591 = vmax.f32 %v585, 0.0
        %v592 = vmax.f32 %v587, 0.0
        %v593 = vld [vmem:[%s7] sm:$0xf]
        %v594 = vpack.c.bf16 %v591, %v591
        %v595 = vpack.c.bf16 %v592, %v592
        %v596 = vld [vmem:[%s8] sm:$0xff]
        %598 = vset.pattern.permute.xlu0 0
        %599 = vperm.xlu0 %598, %v596
        %v600 = vpop.permute.xlu0 %599
        %vm602 = vcmask 64512
        %v604 = vsel %vm602, %v593, 0
        %v607 = vsel %vm543, %v594, 0
        %v610 = vsel %vm543, %v595, 0
        %612 = vmatprep.subr.bf16.mxu0 %v610
        %613 = vmatpush1.bf16.msra.mxu0 %v607
        %614 = vmatprep.subr.bf16.mxu0 0
        %615 = vmatpush1.bf16.msra.mxu0 0
        %616 = vmatprep.subr.bf16.mxu0 0
        %617 = vmatpush1.bf16.msra.mxu0 0
        %618 = vmatprep.subr.bf16.mxu0 0
        %619 = vmatpush1.bf16.msra.mxu0 0
        %620 = vmatprep.subr.bf16.mxu0 0
        %621 = vmatpush1.bf16.msra.mxu0 0
        %622 = vmatprep.subr.bf16.mxu0 0
        %623 = vmatpush1.bf16.msra.mxu0 0
        %624 = vmatprep.subr.bf16.mxu0 0
        %625 = vmatpush1.bf16.msra.mxu0 0
        %626 = vmatprep.subr.bf16.mxu0 0
        %627 = vmatpush1.bf16.msra.mxu0 0
        %628 = vmatprep.subr.bf16.mxu0 0
        %629 = vmatpush1.bf16.msra.mxu0 0
        %630 = vmatprep.subr.bf16.mxu0 0
        %631 = vmatpush1.bf16.msra.mxu0 0
        %632 = vmatprep.subr.bf16.mxu0 0
        %633 = vmatpush1.bf16.msra.mxu0 0
        %634 = vmatprep.subr.bf16.mxu0 0
        %635 = vmatpush1.bf16.msra.mxu0 0
        %636 = vmatprep.subr.bf16.mxu0 0
        %637 = vmatpush1.bf16.msra.mxu0 0
        %638 = vmatprep.subr.bf16.mxu0 0
        %639 = vmatpush1.bf16.msra.mxu0 0
        %640 = vmatprep.subr.bf16.mxu0 0
        %641 = vmatpush1.bf16.msra.mxu0 0
        %642 = vmatprep.subr.bf16.mxu0 0
        %643 = vmatpush1.bf16.msra.mxu0 0
        %644 = vmatprep.mubr.bf16.mxu0 0
        %645 = vmatmul.mubr.bf16.gmra.mrb[0].mxu0 %v604
        %v646 = vpop.f32.mrb[0].mxu0
        %v647 = vadd.f32 %v600, %v646
        %v648 = vpop.f32.mrb[0].mxu0
        %v649 = vadd.f32 %v600, %v648
        %v650 = vpop.f32.mrb[0].mxu0
        %v651 = vpop.f32.mrb[0].mxu0
        %652 = vdwg.mxu0
        %653 = vst [vmem:[%s326] sm:$0xff] %v647
        %654 = vst [vmem:[%s326 + $0x8] sm:$0xff] %v649
        %s655 = sand.u32 %s225, 1
        %s656 = scalar_lea.sflag [#allocation3], %s655
        %s657 = sand.u32 %s225, 1
        %s658 = smul.addr %s657, 16
        %s659 = scalar_lea.vmem [#allocation2], %s658
        // Predicated region
        $region57: #{tpu_custom_call.1} parent=55 // pred_check
          %p660 = pneg %p235
        $region58: #{tpu_custom_call.1} parent=55 // pred_check_branch
          %662 = sbr.rel (%p660) target = $region60
        $region59: #{tpu_custom_call.1} parent=55 // pred_region
          %s663 = smul.u32 2, %s23
          %s665 = ssub.s32 256, 256
          %666 = vsyncadd %s656, %s665
          %s667 = smul.addr %s663, 128
          %s668 = scalar_lea.hbm %s9, %s667
          %s670 = sshll.u32 %s659, 4
          %s671 = int_to_ptr.vmem [resolvable:$true] %s670
          %673 = dma.vmem_to_hbm [thread:$0]  %s671, 256, %s668, %s656
        $region60: #{tpu_custom_call.1} parent=55 // pred_fallthru
          _
      $region56: #{tpu_custom_call.1} parent=5 // pred_fallthru
        _
      %p674 = scmp.le.s32.totalorder 2, %s18
      // Predicated region
      $region61: #{tpu_custom_call.1} parent=5 // pred_check
        %p675 = pneg %p674
      $region62: #{tpu_custom_call.1} parent=5 // pred_check_branch
        %677 = sbr.rel (%p675) target = $region64
      $region63: #{tpu_custom_call.1} parent=5 // pred_region
        %s678 = ssub.s32 %s18, 2
        // Predicated region
        $region65: #{tpu_custom_call.1} parent=63 // pred_check
          %p679 = pneg %p241
        $region66: #{tpu_custom_call.1} parent=63 // pred_check_branch
          %681 = sbr.rel (%p679) target = $region68
        $region67: #{tpu_custom_call.1} parent=63 // pred_region
          %s682 = sand.u32 %s226, 1
          %s683 = scalar_lea.sflag [#allocation3], %s682
          %s684 = sand.u32 %s226, 1
          %s685 = smul.addr %s684, 16
          %s686 = scalar_lea.vmem [#allocation2], %s685
          %687 = dma.done %s683, 256
        $region68: #{tpu_custom_call.1} parent=63 // pred_fallthru
          _
      $region64: #{tpu_custom_call.1} parent=5 // pred_fallthru
        _
    $region6: #{tpu_custom_call.1} parent=1 // loop_footer
      %s22 = sadd.s32 1, %s18
    $region7: #{tpu_custom_call.1} parent=1 // loop_footer_branch
      %17 = sbr.rel target = $region3
    $region8: #{tpu_custom_call.1} parent=1 // loop_exit
      _
    %688 = vsyncpa [#allocation3], 1
    %s689 = scalar_lea.sflag [#allocation3], 1
    %690 = vsyncpa %s689, 1

</llo_original>
